<compile_context>
chip_gen: v7x
topology: tpu7x:2x2x1
jax: 0.10.0
libtpu: 0.0.40
codegen_flags: <defaults>
</compile_context>

<pallas_src>
import functools

import jax
import jax.numpy as jnp
from jax.experimental import pallas as pl
from jax.experimental.pallas import tpu as pltpu

# ---------------- config (small, BERT-like) ----------------
VOCAB_SIZE = 64
HIDDEN = 32
MAX_POS = 16
TYPE_VOCAB = 2
EPS = 1e-12
TOKENS_PER_BLOCK = 256  # tokens per grid step (lane dim; multiple of 128)


def _round_up(x, m):
    return ((x + m - 1) // m) * m


def _embeddings_kernel(ids_ref,            # (8, tt) int32: rows 0..2 = fused ids
                       tab_ref,            # (3, H, 128) bf16: hi/mid/lo table chunks
                       gamma_ref, beta_ref,  # (H, 1) f32 LayerNorm params
                       out_ref):           # (H, tt) f32 output tile (tokens on lanes)
    tt = out_ref.shape[1]
    k_rows = tab_ref.shape[2]

    # (K, tt) row-index iota. Ids were pre-offset into the fused-table row
    # space (word [0,V), position [V,V+P), type [V+P,V+P+T)); invalid / pad
    # ids are -1 and therefore never match -> exact zero contribution.
    row = jax.lax.broadcasted_iota(jnp.int32, (k_rows, tt), 0)
    hit = ((row == ids_ref[0:1, :]) |
           (row == ids_ref[1:2, :]) |
           (row == ids_ref[2:3, :]))
    oh = hit.astype(jnp.bfloat16)   # "3-hot": one matmul sums word+pos+type rows

    # f32-exact gather: the fused table was split wrapper-side into bf16
    # hi/mid/lo chunks (hi+mid+lo == f32 table), so three single-pass bf16
    # MXU matmuls with f32 accumulation replace a 6-pass HIGHEST f32 matmul.
    x = jnp.dot(tab_ref[0], oh, preferred_element_type=jnp.float32)
    x = x + jnp.dot(tab_ref[1], oh, preferred_element_type=jnp.float32)
    x = x + jnp.dot(tab_ref[2], oh, preferred_element_type=jnp.float32)

    # LayerNorm over hidden dim = axis 0 in this tokens-on-lanes layout
    # (biased variance, matching torch.nn.LayerNorm).
    mean = jnp.mean(x, axis=0, keepdims=True)
    xc = x - mean
    var = jnp.mean(xc * xc, axis=0, keepdims=True)
    y = xc * jax.lax.rsqrt(var + EPS)
    y = y * gamma_ref[...] + beta_ref[...]

    # TODO(synk): training-mode dropout (pltpu.prng_seed + prng_random_bits
    # masking) not implemented; eval-mode dropout is the identity.
    out_ref[...] = y.astype(out_ref.dtype)


@functools.partial(jax.jit, static_argnames=("tokens_per_block",))
def bert_embeddings(input_ids, position_ids, token_type_ids,
                    word_table, pos_table, type_table, gamma, beta,
                    tokens_per_block=TOKENS_PER_BLOCK):
    B, S = input_ids.shape
    V, H = word_table.shape
    P = pos_table.shape[0]
    T = type_table.shape[0]
    N = B * S

    # ---- fused table: rows [word | position | type], padded to K=128 ----
    k_pad = _round_up(V + P + T, 128)
    fused = jnp.zeros((k_pad, H), jnp.float32)
    fused = fused.at[:V].set(word_table.astype(jnp.float32))
    fused = fused.at[V:V + P].set(pos_table.astype(jnp.float32))
    fused = fused.at[V + P:V + P + T].set(type_table.astype(jnp.float32))
    fused_t = fused.T                                   # (H, 128)
    hi = fused_t.astype(jnp.bfloat16)
    r1 = fused_t - hi.astype(jnp.float32)
    mid = r1.astype(jnp.bfloat16)
    lo = (r1 - mid.astype(jnp.float32)).astype(jnp.bfloat16)
    tab = jnp.stack([hi, mid, lo], axis=0)              # (3, H, 128) bf16

    # ---- ids: flatten, offset into fused row space, OOB -> -1 (zero row) ----
    wid = input_ids.reshape(N).astype(jnp.int32)
    pid = position_ids.reshape(N).astype(jnp.int32)
    tid = token_type_ids.reshape(N).astype(jnp.int32)
    wid = jnp.where((wid >= 0) & (wid < V), wid, -1)
    pid = jnp.where((pid >= 0) & (pid < P), pid + V, -1)
    tid = jnp.where((tid >= 0) & (tid < T), tid + V + P, -1)
    ids = jnp.stack([wid, pid, tid], axis=0)            # (3, N)

    # ---- token tiling: tokens live on lanes -> multiples of 128 ----
    n_tok = _round_up(N, 128)
    tt = min(tokens_per_block, n_tok)
    # v7x: if everything would fit one tile, split into >=2 parallel steps
    # so both TensorCores get work (no effect on v5e/v6e single-TC).
    if tt == n_tok and n_tok >= 256:
        tt = _round_up(n_tok // 2, 128)
    n_pad = _round_up(n_tok, tt)

    # Merge into one (8, n_pad) id block: one DMA stream per step, sublane-
    # aligned; rows 3..7 and padded tokens are -1 (never match the one-hot).
    ids = jnp.pad(ids, ((0, 5), (0, n_pad - N)), constant_values=-1)

    gamma_c = gamma.reshape(H, 1).astype(jnp.float32)
    beta_c = beta.reshape(H, 1).astype(jnp.float32)

    grid = (n_pad // tt,)
    out_t = pl.pallas_call(
        _embeddings_kernel,
        out_shape=jax.ShapeDtypeStruct((H, n_pad), jnp.float32),
        grid_spec=pltpu.PrefetchScalarGridSpec(
            num_scalar_prefetch=0,
            grid=grid,
            in_specs=[
                pl.BlockSpec((8, tt), lambda i: (0, i)),          # merged ids
                # Resident (constant block index) table / params.
                pl.BlockSpec((3, H, k_pad), lambda i: (0, 0, 0)),
                pl.BlockSpec((H, 1), lambda i: (0, 0)),
                pl.BlockSpec((H, 1), lambda i: (0, 0)),
            ],
            out_specs=pl.BlockSpec((H, tt), lambda i: (0, i)),    # lane-dense
        ),
        compiler_params=pltpu.CompilerParams(
            dimension_semantics=("parallel",)),
    )(ids, tab, gamma_c, beta_c)

    # Back to (B, S, H) for parity with the PyTorch module's output layout.
    return out_t.T[:N].reshape(B, S, H)


def _reference(input_ids, position_ids, token_type_ids,
               word_table, pos_table, type_table, gamma, beta):
    w = jnp.take(word_table, input_ids, axis=0)
    p = jnp.take(pos_table, position_ids, axis=0)
    t = jnp.take(type_table, token_type_ids, axis=0)
    x = w + p + t
    mean = jnp.mean(x, axis=-1, keepdims=True)
    var = jnp.mean((x - mean) ** 2, axis=-1, keepdims=True)
    return (x - mean) * jax.lax.rsqrt(var + EPS) * gamma + beta


if __name__ == "__main__":
    key = jax.random.PRNGKey(0)
    (k_w, k_p, k_t, k_ids, k_ids2, k_pos2, k_typ2,
     k_ids3, k_pos3, k_typ3) = jax.random.split(key, 10)

    # Deterministic "checkpoint-free" parameters (nn.Embedding ~ N(0,1)).
    word_table = jax.random.normal(k_w, (VOCAB_SIZE, HIDDEN), jnp.float32)
    word_table = word_table.at[0].set(0.0)   # padding_idx=0 row
    pos_table = jax.random.normal(k_p, (MAX_POS, HIDDEN), jnp.float32)
    type_table = jax.random.normal(k_t, (TYPE_VOCAB, HIDDEN), jnp.float32)
    gamma = jnp.ones((HIDDEN,), jnp.float32)   # LayerNorm weight
    beta = jnp.zeros((HIDDEN,), jnp.float32)   # LayerNorm bias

    # --- small test (matches the module's toy shapes) ---
    B, S = 2, 8
    input_ids = jax.random.randint(k_ids, (B, S), 0, VOCAB_SIZE, jnp.int32)
    position_ids = jnp.broadcast_to(jnp.arange(S, dtype=jnp.int32), (B, S))
    token_type_ids = jnp.zeros((B, S), jnp.int32)  # forward's None path

    out = bert_embeddings(input_ids, position_ids, token_type_ids,
                          word_table, pos_table, type_table, gamma, beta)
    out = jax.block_until_ready(out)
    ref = _reference(input_ids, position_ids, token_type_ids,
                     word_table, pos_table, type_table, gamma, beta)
    assert out.shape == (B, S, HIDDEN)
    assert jnp.allclose(out, ref, atol=1e-5, rtol=1e-5)

    # --- larger test exercising full 256-token tiles and a multi-step grid ---
    B2, S2 = 2, 512   # N = 1024 -> tt = 256, grid = (4,)
    input_ids2 = jax.random.randint(k_ids2, (B2, S2), 0, VOCAB_SIZE, jnp.int32)
    position_ids2 = jax.random.randint(k_pos2, (B2, S2), 0, MAX_POS, jnp.int32)
    token_type_ids2 = jax.random.randint(k_typ2, (B2, S2), 0, TYPE_VOCAB, jnp.int32)

    out2 = bert_embeddings(input_ids2, position_ids2, token_type_ids2,
                           word_table, pos_table, type_table, gamma, beta)
    out2 = jax.block_until_ready(out2)
    ref2 = _reference(input_ids2, position_ids2, token_type_ids2,
                      word_table, pos_table, type_table, gamma, beta)
    assert out2.shape == (B2, S2, HIDDEN)
    assert jnp.allclose(out2, ref2, atol=1e-5, rtol=1e-5)

    # --- test exercising the "split one tile into 2 parallel steps" path ---
    B3, S3 = 1, 256   # N = 256 -> tt = 128, grid = (2,)
    input_ids3 = jax.random.randint(k_ids3, (B3, S3), 0, VOCAB_SIZE, jnp.int32)
    position_ids3 = jax.random.randint(k_pos3, (B3, S3), 0, MAX_POS, jnp.int32)
    token_type_ids3 = jax.random.randint(k_typ3, (B3, S3), 0, TYPE_VOCAB, jnp.int32)

    out3 = bert_embeddings(input_ids3, position_ids3, token_type_ids3,
                           word_table, pos_table, type_table, gamma, beta)
    out3 = jax.block_until_ready(out3)
    ref3 = _reference(input_ids3, position_ids3, token_type_ids3,
                      word_table, pos_table, type_table, gamma, beta)
    assert out3.shape == (B3, S3, HIDDEN)
    assert jnp.allclose(out3, ref3, atol=1e-5, rtol=1e-5)

    print("KERNEL_OK")
</pallas_src>

<mosaic_0001>
module attributes {stable_mosaic.version = 11 : i64} {
  func.func @_embeddings_kernel(%arg0: i32, %arg1: memref<8x128xi32, #tpu.memory_space<vmem>>, %arg2: memref<3x32x128xbf16, #tpu.memory_space<vmem>>, %arg3: memref<32x1xf32, #tpu.memory_space<vmem>>, %arg4: memref<32x1xf32, #tpu.memory_space<vmem>>, %arg5: memref<32x128xf32, #tpu.memory_space<vmem>>) attributes {dimension_semantics = [#tpu.dimension_semantics<parallel>], iteration_bounds = array<i64: 1>, scalar_prefetch = 0 : i64, scratch_operands = 0 : i64, tpu.core_type = #tpu.core_type<tc>, window_params = [{transform_indices = @transform_0, window_bounds = array<i64: 8, 128>}, {pipeline_mode = #tpu.pipeline_mode<synchronous>, transform_indices = @transform_1, window_bounds = array<i64: 3, 32, 128>}, {pipeline_mode = #tpu.pipeline_mode<synchronous>, transform_indices = @transform_2, window_bounds = array<i64: 32, 1>}, {pipeline_mode = #tpu.pipeline_mode<synchronous>, transform_indices = @transform_3, window_bounds = array<i64: 32, 1>}, {transform_indices = @transform_4, window_bounds = array<i64: 32, 128>}]} {
    %0 = tpu.iota {dimensions = array<i32: 0>} : vector<128x128xi32>
    %c0 = arith.constant 0 : index
    %c0_0 = arith.constant 0 : index
    %1 = vector.load %arg1[%c0, %c0_0] : memref<8x128xi32, #tpu.memory_space<vmem>>, vector<1x128xi32>
    %2 = vector.broadcast %1 : vector<1x128xi32> to vector<128x128xi32>
    %3 = arith.cmpi eq, %0, %2 : vector<128x128xi32>
    %c1 = arith.constant 1 : index
    %c0_1 = arith.constant 0 : index
    %4 = vector.load %arg1[%c1, %c0_1] : memref<8x128xi32, #tpu.memory_space<vmem>>, vector<1x128xi32>
    %5 = vector.broadcast %4 : vector<1x128xi32> to vector<128x128xi32>
    %6 = arith.cmpi eq, %0, %5 : vector<128x128xi32>
    %7 = arith.ori %3, %6 : vector<128x128xi1>
    %c2 = arith.constant 2 : index
    %c0_2 = arith.constant 0 : index
    %8 = vector.load %arg1[%c2, %c0_2] : memref<8x128xi32, #tpu.memory_space<vmem>>, vector<1x128xi32>
    %9 = vector.broadcast %8 : vector<1x128xi32> to vector<128x128xi32>
    %10 = arith.cmpi eq, %0, %9 : vector<128x128xi32>
    %11 = arith.ori %7, %10 : vector<128x128xi1>
    %12 = arith.extui %11 : vector<128x128xi1> to vector<128x128xi32>
    %13 = arith.sitofp %12 : vector<128x128xi32> to vector<128x128xf32>
    %14 = arith.truncf %13 : vector<128x128xf32> to vector<128x128xbf16>
    %c0_3 = arith.constant 0 : index
    %c0_4 = arith.constant 0 : index
    %c0_5 = arith.constant 0 : index
    %15 = vector.load %arg2[%c0_3, %c0_4, %c0_5] : memref<3x32x128xbf16, #tpu.memory_space<vmem>>, vector<1x32x128xbf16>
    %16 = vector.shape_cast %15 : vector<1x32x128xbf16> to vector<32x128xbf16>
    %cst = arith.constant dense<0.000000e+00> : vector<32x128xf32>
    %17 = tpu.matmul %16, %14, %cst {dimension_numbers = #tpu.dot_dimension_numbers<[1], [0], [0], [1], [0, 0, 1, 1], [], []>} : vector<32x128xbf16>, vector<128x128xbf16>, vector<32x128xf32> -> vector<32x128xf32>
    %c1_6 = arith.constant 1 : index
    %c0_7 = arith.constant 0 : index
    %c0_8 = arith.constant 0 : index
    %18 = vector.load %arg2[%c1_6, %c0_7, %c0_8] : memref<3x32x128xbf16, #tpu.memory_space<vmem>>, vector<1x32x128xbf16>
    %19 = vector.shape_cast %18 : vector<1x32x128xbf16> to vector<32x128xbf16>
    %cst_9 = arith.constant dense<0.000000e+00> : vector<32x128xf32>
    %20 = tpu.matmul %19, %14, %cst_9 {dimension_numbers = #tpu.dot_dimension_numbers<[1], [0], [0], [1], [0, 0, 1, 1], [], []>} : vector<32x128xbf16>, vector<128x128xbf16>, vector<32x128xf32> -> vector<32x128xf32>
    %21 = arith.addf %17, %20 : vector<32x128xf32>
    %c2_10 = arith.constant 2 : index
    %c0_11 = arith.constant 0 : index
    %c0_12 = arith.constant 0 : index
    %22 = vector.load %arg2[%c2_10, %c0_11, %c0_12] : memref<3x32x128xbf16, #tpu.memory_space<vmem>>, vector<1x32x128xbf16>
    %23 = vector.shape_cast %22 : vector<1x32x128xbf16> to vector<32x128xbf16>
    %cst_13 = arith.constant dense<0.000000e+00> : vector<32x128xf32>
    %24 = tpu.matmul %23, %14, %cst_13 {dimension_numbers = #tpu.dot_dimension_numbers<[1], [0], [0], [1], [0, 0, 1, 1], [], []>} : vector<32x128xbf16>, vector<128x128xbf16>, vector<32x128xf32> -> vector<32x128xf32>
    %25 = arith.addf %21, %24 : vector<32x128xf32>
    %cst_14 = arith.constant dense<0.000000e+00> : vector<128xf32>
    %26 = vector.multi_reduction <add>, %25, %cst_14 [0] : vector<32x128xf32> to vector<128xf32>
    %27 = vector.shape_cast %26 : vector<128xf32> to vector<1x128xf32>
    %cst_15 = arith.constant 3.200000e+01 : f32
    %28 = vector.broadcast %cst_15 : f32 to vector<1x128xf32>
    %29 = arith.divf %27, %28 : vector<1x128xf32>
    %30 = vector.broadcast %29 : vector<1x128xf32> to vector<32x128xf32>
    %31 = arith.subf %25, %30 : vector<32x128xf32>
    %32 = arith.mulf %31, %31 : vector<32x128xf32>
    %cst_16 = arith.constant dense<0.000000e+00> : vector<128xf32>
    %33 = vector.multi_reduction <add>, %32, %cst_16 [0] : vector<32x128xf32> to vector<128xf32>
    %34 = vector.shape_cast %33 : vector<128xf32> to vector<1x128xf32>
    %cst_17 = arith.constant 3.200000e+01 : f32
    %35 = vector.broadcast %cst_17 : f32 to vector<1x128xf32>
    %36 = arith.divf %34, %35 : vector<1x128xf32>
    %cst_18 = arith.constant 9.99999996E-13 : f32
    %37 = vector.broadcast %cst_18 : f32 to vector<1x128xf32>
    %38 = arith.addf %36, %37 : vector<1x128xf32>
    %39 = math.rsqrt %38 : vector<1x128xf32>
    %40 = vector.broadcast %39 : vector<1x128xf32> to vector<32x128xf32>
    %41 = arith.mulf %31, %40 : vector<32x128xf32>
    %c0_19 = arith.constant 0 : index
    %c0_20 = arith.constant 0 : index
    %42 = vector.load %arg3[%c0_19, %c0_20] : memref<32x1xf32, #tpu.memory_space<vmem>>, vector<32x1xf32>
    %43 = vector.broadcast %42 : vector<32x1xf32> to vector<32x128xf32>
    %44 = arith.mulf %41, %43 : vector<32x128xf32>
    %c0_21 = arith.constant 0 : index
    %c0_22 = arith.constant 0 : index
    %45 = vector.load %arg4[%c0_21, %c0_22] : memref<32x1xf32, #tpu.memory_space<vmem>>, vector<32x1xf32>
    %46 = vector.broadcast %45 : vector<32x1xf32> to vector<32x128xf32>
    %47 = arith.addf %44, %46 : vector<32x128xf32>
    %c0_23 = arith.constant 0 : index
    %c0_24 = arith.constant 0 : index
    %48 = vector.load %arg5[%c0_23, %c0_24] : memref<32x128xf32, #tpu.memory_space<vmem>>, vector<32x128xf32>
    tpu.vector_store %arg5[%c0_23, %c0_24], %47 {strides = array<i32>} : memref<32x128xf32, #tpu.memory_space<vmem>>, vector<32x128xf32>,
    return
  }
  func.func @transform_0(%arg0: i32) -> (i32, i32) {
    %c0_i32 = arith.constant 0 : i32
    %c0_i32_0 = arith.constant 0 : i32
    return %c0_i32, %arg0 : i32, i32
  }
  func.func @transform_1(%arg0: i32) -> (i32, i32, i32) {
    %c0_i32 = arith.constant 0 : i32
    %c0_i32_0 = arith.constant 0 : i32
    %c0_i32_1 = arith.constant 0 : i32
    %c0_i32_2 = arith.constant 0 : i32
    return %c0_i32, %c0_i32_0, %c0_i32_1 : i32, i32, i32
  }
  func.func @transform_2(%arg0: i32) -> (i32, i32) {
    %c0_i32 = arith.constant 0 : i32
    %c0_i32_0 = arith.constant 0 : i32
    %c0_i32_1 = arith.constant 0 : i32
    return %c0_i32, %c0_i32_0 : i32, i32
  }
  func.func @transform_3(%arg0: i32) -> (i32, i32) {
    %c0_i32 = arith.constant 0 : i32
    %c0_i32_0 = arith.constant 0 : i32
    %c0_i32_1 = arith.constant 0 : i32
    return %c0_i32, %c0_i32_0 : i32, i32
  }
  func.func @transform_4(%arg0: i32) -> (i32, i32) {
    %c0_i32 = arith.constant 0 : i32
    %c0_i32_0 = arith.constant 0 : i32
    return %c0_i32, %arg0 : i32, i32
  }
}

</mosaic_0001>

<llo_original>
// kernel: bert_embeddings.1
$region0: #{bert_embeddings.1}
  #allocation0 [shape = 'u32[]', space=smem, size = 0x4, offset = 0x4, fixed_abs, tag = 'smem constant byte address 0x4 - core index']
  #allocation1 [shape = 'u32[144,128]{1,0:T(1,128)}', space=vmem, size = 0x12000, scoped, tag = 'internal scratch']
  %s0 = inlined_call_operand.vmem [shape: s32[8,128], index: 0, kind: input, shape index: {}]
  %s1 = inlined_call_operand.vmem [shape: bf16[3,32,128], index: 1, kind: input, shape index: {}]
  %s2 = inlined_call_operand.vmem [shape: f32[32,1], index: 2, kind: input, shape index: {}]
  %s3 = inlined_call_operand.vmem [shape: f32[32,1], index: 3, kind: input, shape index: {}]
  %s4 = inlined_call_operand.vmem [shape: f32[32,128], index: 4, kind: output, shape index: {}]
  %s5 = sld [smem:[#allocation0]]
  $region26: #{bert_embeddings.1} parent=0
    _
  %s7 = ssub.s32 1, %s5
  %s8 = scalar_select 0, %s7, %s5
  // Predicated region
  $region2: #{bert_embeddings.1} parent=0 // pred_check
    _
  $region3: #{bert_embeddings.1} parent=0 // pred_check_branch
    %10 = sbr.rel (0) target = $region5
  $region4: #{bert_embeddings.1} parent=0 // pred_region
    _
  $region5: #{bert_embeddings.1} parent=0 // pred_fallthru
    _
  // Predicated region
  $region6: #{bert_embeddings.1} parent=0 // pred_check
    _
  $region7: #{bert_embeddings.1} parent=0 // pred_check_branch
    %12 = sbr.rel (0) target = $region9
  $region8: #{bert_embeddings.1} parent=0 // pred_region
    _
  $region9: #{bert_embeddings.1} parent=0 // pred_fallthru
    _
  // Predicated region
  $region10: #{bert_embeddings.1} parent=0 // pred_check
    _
  $region11: #{bert_embeddings.1} parent=0 // pred_check_branch
    %14 = sbr.rel (0) target = $region13
  $region12: #{bert_embeddings.1} parent=0 // pred_region
    _
  $region13: #{bert_embeddings.1} parent=0 // pred_fallthru
    _
  // Predicated region
  $region14: #{bert_embeddings.1} parent=0 // pred_check
    _
  $region15: #{bert_embeddings.1} parent=0 // pred_check_branch
    %16 = sbr.rel (0) target = $region17
  $region16: #{bert_embeddings.1} parent=0 // pred_region
    _
  $region17: #{bert_embeddings.1} parent=0 // pred_fallthru
    _
  %v18 = vlaneseq
  %v19 = vshrl.u32 %v18, 7
  %v20 = vadd.s32 %v19, 8
  %v21 = vadd.s32 %v19, 16
  %v22 = vadd.s32 %v19, 24
  %v23 = vadd.s32 %v19, 32
  %v24 = vadd.s32 %v19, 40
  %v25 = vadd.s32 %v19, 48
  %v26 = vadd.s32 %v19, 56
  %v27 = vadd.s32 %v19, 64
  %v28 = vadd.s32 %v19, 72
  %v29 = vadd.s32 %v19, 80
  %v30 = vadd.s32 %v19, 88
  %v31 = vadd.s32 %v19, 96
  %v32 = vadd.s32 %v19, 104
  %v33 = vadd.s32 %v19, 112
  %v34 = vadd.s32 %v19, 120
  %v35 = vld [vmem:[%s0] sm:$0x1]
  %v36 = vlaneseq
  %v37 = vshrl.u32 %v36, 7
  %v38 = vsub.s32 0, %v37
  %v39 = vrot.slane %v35, %v38
  %vm40 = vcmp.eq.s32.totalorder %v19, %v39
  %vm41 = vcmp.eq.s32.totalorder %v20, %v39
  %vm42 = vcmp.eq.s32.totalorder %v21, %v39
  %vm43 = vcmp.eq.s32.totalorder %v22, %v39
  %vm44 = vcmp.eq.s32.totalorder %v23, %v39
  %vm45 = vcmp.eq.s32.totalorder %v24, %v39
  %vm46 = vcmp.eq.s32.totalorder %v25, %v39
  %vm47 = vcmp.eq.s32.totalorder %v26, %v39
  %vm48 = vcmp.eq.s32.totalorder %v27, %v39
  %vm49 = vcmp.eq.s32.totalorder %v28, %v39
  %vm50 = vcmp.eq.s32.totalorder %v29, %v39
  %vm51 = vcmp.eq.s32.totalorder %v30, %v39
  %vm52 = vcmp.eq.s32.totalorder %v31, %v39
  %vm53 = vcmp.eq.s32.totalorder %v32, %v39
  %vm54 = vcmp.eq.s32.totalorder %v33, %v39
  %vm55 = vcmp.eq.s32.totalorder %v34, %v39
  %v56 = vld [vmem:[%s0 + $0x1] sm:$0x1]
  %v57 = vlaneseq
  %v58 = vshrl.u32 %v57, 7
  %v59 = vsub.s32 0, %v58
  %v60 = vrot.slane %v56, %v59
  %vm61 = vcmp.eq.s32.totalorder %v19, %v60
  %vm62 = vcmp.eq.s32.totalorder %v20, %v60
  %vm63 = vcmp.eq.s32.totalorder %v21, %v60
  %vm64 = vcmp.eq.s32.totalorder %v22, %v60
  %vm65 = vcmp.eq.s32.totalorder %v23, %v60
  %vm66 = vcmp.eq.s32.totalorder %v24, %v60
  %vm67 = vcmp.eq.s32.totalorder %v25, %v60
  %vm68 = vcmp.eq.s32.totalorder %v26, %v60
  %vm69 = vcmp.eq.s32.totalorder %v27, %v60
  %vm70 = vcmp.eq.s32.totalorder %v28, %v60
  %vm71 = vcmp.eq.s32.totalorder %v29, %v60
  %vm72 = vcmp.eq.s32.totalorder %v30, %v60
  %vm73 = vcmp.eq.s32.totalorder %v31, %v60
  %vm74 = vcmp.eq.s32.totalorder %v32, %v60
  %vm75 = vcmp.eq.s32.totalorder %v33, %v60
  %vm76 = vcmp.eq.s32.totalorder %v34, %v60
  %vm77 = vmor %vm40, %vm61
  %vm78 = vmor %vm41, %vm62
  %vm79 = vmor %vm42, %vm63
  %vm80 = vmor %vm43, %vm64
  %vm81 = vmor %vm44, %vm65
  %vm82 = vmor %vm45, %vm66
  %vm83 = vmor %vm46, %vm67
  %vm84 = vmor %vm47, %vm68
  %vm85 = vmor %vm48, %vm69
  %vm86 = vmor %vm49, %vm70
  %vm87 = vmor %vm50, %vm71
  %vm88 = vmor %vm51, %vm72
  %vm89 = vmor %vm52, %vm73
  %vm90 = vmor %vm53, %vm74
  %vm91 = vmor %vm54, %vm75
  %vm92 = vmor %vm55, %vm76
  %v93 = vld [vmem:[%s0 + $0x2] sm:$0x1]
  %v94 = vlaneseq
  %v95 = vshrl.u32 %v94, 7
  %v96 = vsub.s32 0, %v95
  %v97 = vrot.slane %v93, %v96
  %vm98 = vcmp.eq.s32.totalorder %v19, %v97
  %vm99 = vcmp.eq.s32.totalorder %v20, %v97
  %vm100 = vcmp.eq.s32.totalorder %v21, %v97
  %vm101 = vcmp.eq.s32.totalorder %v22, %v97
  %vm102 = vcmp.eq.s32.totalorder %v23, %v97
  %vm103 = vcmp.eq.s32.totalorder %v24, %v97
  %vm104 = vcmp.eq.s32.totalorder %v25, %v97
  %vm105 = vcmp.eq.s32.totalorder %v26, %v97
  %vm106 = vcmp.eq.s32.totalorder %v27, %v97
  %vm107 = vcmp.eq.s32.totalorder %v28, %v97
  %vm108 = vcmp.eq.s32.totalorder %v29, %v97
  %vm109 = vcmp.eq.s32.totalorder %v30, %v97
  %vm110 = vcmp.eq.s32.totalorder %v31, %v97
  %vm111 = vcmp.eq.s32.totalorder %v32, %v97
  %vm112 = vcmp.eq.s32.totalorder %v33, %v97
  %vm113 = vcmp.eq.s32.totalorder %v34, %v97
  %vm114 = vmor %vm77, %vm98
  %vm115 = vmor %vm78, %vm99
  %vm116 = vmor %vm79, %vm100
  %vm117 = vmor %vm80, %vm101
  %vm118 = vmor %vm81, %vm102
  %vm119 = vmor %vm82, %vm103
  %vm120 = vmor %vm83, %vm104
  %vm121 = vmor %vm84, %vm105
  %vm122 = vmor %vm85, %vm106
  %vm123 = vmor %vm86, %vm107
  %vm124 = vmor %vm87, %vm108
  %vm125 = vmor %vm88, %vm109
  %vm126 = vmor %vm89, %vm110
  %vm127 = vmor %vm90, %vm111
  %vm128 = vmor %vm91, %vm112
  %vm129 = vmor %vm92, %vm113
  %v130 = vsel %vm114, 1, 0
  %v131 = vsel %vm115, 1, 0
  %v132 = vsel %vm116, 1, 0
  %v133 = vsel %vm117, 1, 0
  %v134 = vsel %vm118, 1, 0
  %v135 = vsel %vm119, 1, 0
  %v136 = vsel %vm120, 1, 0
  %v137 = vsel %vm121, 1, 0
  %v138 = vsel %vm122, 1, 0
  %v139 = vsel %vm123, 1, 0
  %v140 = vsel %vm124, 1, 0
  %v141 = vsel %vm125, 1, 0
  %v142 = vsel %vm126, 1, 0
  %v143 = vsel %vm127, 1, 0
  %v144 = vsel %vm128, 1, 0
  %v145 = vsel %vm129, 1, 0
  %v146 = vcvt.s32.f32 %v130
  %v147 = vcvt.s32.f32 %v131
  %v148 = vcvt.s32.f32 %v132
  %v149 = vcvt.s32.f32 %v133
  %v150 = vcvt.s32.f32 %v134
  %v151 = vcvt.s32.f32 %v135
  %v152 = vcvt.s32.f32 %v136
  %v153 = vcvt.s32.f32 %v137
  %v154 = vcvt.s32.f32 %v138
  %v155 = vcvt.s32.f32 %v139
  %v156 = vcvt.s32.f32 %v140
  %v157 = vcvt.s32.f32 %v141
  %v158 = vcvt.s32.f32 %v142
  %v159 = vcvt.s32.f32 %v143
  %v160 = vcvt.s32.f32 %v144
  %v161 = vcvt.s32.f32 %v145
  %v162 = vpack.c.bf16 %v147, %v146
  %v163 = vpack.c.bf16 %v149, %v148
  %v164 = vpack.c.bf16 %v151, %v150
  %v165 = vpack.c.bf16 %v153, %v152
  %v166 = vpack.c.bf16 %v155, %v154
  %v167 = vpack.c.bf16 %v157, %v156
  %v168 = vpack.c.bf16 %v159, %v158
  %v169 = vpack.c.bf16 %v161, %v160
  %v170 = vld [vmem:[%s1] sm:$0xf]
  %v171 = vld [vmem:[%s1 + $0x4] sm:$0xf]
  %v172 = vld [vmem:[%s1 + $0x8] sm:$0xf]
  %v173 = vld [vmem:[%s1 + $0xc] sm:$0xf]
  %s174 = scalar_lea.vmem %s1, 16
  %v175 = vld [vmem:[%s174] sm:$0xf]
  %v176 = vld [vmem:[%s174 + $0x4] sm:$0xf]
  %v177 = vld [vmem:[%s174 + $0x8] sm:$0xf]
  %v178 = vld [vmem:[%s174 + $0xc] sm:$0xf]
  %v183 = vunpack.c.l.b16 %v175
  %v184 = vunpack.c.l.b16 %v176
  %v185 = vunpack.c.l.b16 %v177
  %v186 = vunpack.c.l.b16 %v178
  %v187 = vpack.c.b16 %v184, %v183
  %v188 = vpack.c.b16 %v186, %v185
  %191 = vmatprep.subr.bf16.mxu0 0
  %192 = vmatpush1.bf16.msra.mxu0 %v162
  %193 = vmatprep.subr.bf16.mxu0 0
  %194 = vmatpush1.bf16.msra.mxu0 %v163
  %195 = vmatprep.subr.bf16.mxu0 0
  %196 = vmatpush1.bf16.msra.mxu0 %v164
  %197 = vmatprep.subr.bf16.mxu0 0
  %198 = vmatpush1.bf16.msra.mxu0 %v165
  %199 = vmatprep.subr.bf16.mxu0 0
  %200 = vmatpush1.bf16.msra.mxu0 %v166
  %201 = vmatprep.subr.bf16.mxu0 0
  %202 = vmatpush1.bf16.msra.mxu0 %v167
  %203 = vmatprep.subr.bf16.mxu0 0
  %204 = vmatpush1.bf16.msra.mxu0 %v168
  %205 = vmatprep.subr.bf16.mxu0 0
  %206 = vmatpush1.bf16.msra.mxu0 %v169
  %207 = vmatprep.subr.bf16.mxu0 0
  %208 = vmatpush1.bf16.msra.mxu0 0
  %209 = vmatprep.subr.bf16.mxu0 0
  %210 = vmatpush1.bf16.msra.mxu0 0
  %211 = vmatprep.subr.bf16.mxu0 0
  %212 = vmatpush1.bf16.msra.mxu0 0
  %213 = vmatprep.subr.bf16.mxu0 0
  %214 = vmatpush1.bf16.msra.mxu0 0
  %215 = vmatprep.subr.bf16.mxu0 0
  %216 = vmatpush1.bf16.msra.mxu0 0
  %217 = vmatprep.subr.bf16.mxu0 0
  %218 = vmatpush1.bf16.msra.mxu0 0
  %219 = vmatprep.subr.bf16.mxu0 0
  %220 = vmatpush1.bf16.msra.mxu0 0
  %221 = vmatprep.subr.bf16.mxu0 0
  %222 = vmatpush1.bf16.msra.mxu0 0
  %223 = vmatprep.mubr.bf16.mxu0 0
  %224 = vmatmul.mubr.bf16.gmra.mrb[0].mxu0 %v187
  %v225 = vpop.f32.mrb[0].mxu0
  %v226 = vadd.f32 0.0, %v225
  %v227 = vpop.f32.mrb[0].mxu0
  %v228 = vpop.f32.mrb[0].mxu0
  %v229 = vadd.f32 0.0, %v228
  %v230 = vpop.f32.mrb[0].mxu0
  %231 = vmatprep.mubr.bf16.mxu0 0
  %232 = vmatmul.mubr.bf16.gmra.mrb[0].mxu0 %v188
  %v233 = vpop.f32.mrb[0].mxu0
  %v234 = vadd.f32 0.0, %v233
  %v235 = vpop.f32.mrb[0].mxu0
  %v236 = vpop.f32.mrb[0].mxu0
  %v237 = vadd.f32 0.0, %v236
  %v238 = vpop.f32.mrb[0].mxu0
  %239 = vdwg.mxu0
  %v244 = vunpack.c.l.b16 %v170
  %v245 = vunpack.c.l.b16 %v171
  %v246 = vunpack.c.l.b16 %v172
  %v247 = vunpack.c.l.b16 %v173
  %v248 = vpack.c.b16 %v245, %v244
  %v249 = vpack.c.b16 %v247, %v246
  %252 = vmatprep.subr.bf16.mxu0 0
  %253 = vmatpush1.bf16.msra.mxu0 %v162
  %254 = vmatprep.subr.bf16.mxu0 0
  %255 = vmatpush1.bf16.msra.mxu0 %v163
  %256 = vmatprep.subr.bf16.mxu0 0
  %257 = vmatpush1.bf16.msra.mxu0 %v164
  %258 = vmatprep.subr.bf16.mxu0 0
  %259 = vmatpush1.bf16.msra.mxu0 %v165
  %260 = vmatprep.subr.bf16.mxu0 0
  %261 = vmatpush1.bf16.msra.mxu0 %v166
  %262 = vmatprep.subr.bf16.mxu0 0
  %263 = vmatpush1.bf16.msra.mxu0 %v167
  %264 = vmatprep.subr.bf16.mxu0 0
  %265 = vmatpush1.bf16.msra.mxu0 %v168
  %266 = vmatprep.subr.bf16.mxu0 0
  %267 = vmatpush1.bf16.msra.mxu0 %v169
  %268 = vmatprep.subr.bf16.mxu0 0
  %269 = vmatpush1.bf16.msra.mxu0 0
  %270 = vmatprep.subr.bf16.mxu0 0
  %271 = vmatpush1.bf16.msra.mxu0 0
  %272 = vmatprep.subr.bf16.mxu0 0
  %273 = vmatpush1.bf16.msra.mxu0 0
  %274 = vmatprep.subr.bf16.mxu0 0
  %275 = vmatpush1.bf16.msra.mxu0 0
  %276 = vmatprep.subr.bf16.mxu0 0
  %277 = vmatpush1.bf16.msra.mxu0 0
  %278 = vmatprep.subr.bf16.mxu0 0
  %279 = vmatpush1.bf16.msra.mxu0 0
  %280 = vmatprep.subr.bf16.mxu0 0
  %281 = vmatpush1.bf16.msra.mxu0 0
  %282 = vmatprep.subr.bf16.mxu0 0
  %283 = vmatpush1.bf16.msra.mxu0 0
  %284 = vmatprep.mubr.bf16.mxu0 0
  %285 = vmatmul.mubr.bf16.gmra.mrb[0].mxu0 %v248
  %v286 = vpop.f32.mrb[0].mxu0
  %v287 = vadd.f32 %v226, %v286
  %v288 = vpop.f32.mrb[0].mxu0
  %v289 = vpop.f32.mrb[0].mxu0
  %v290 = vadd.f32 %v229, %v289
  %v291 = vpop.f32.mrb[0].mxu0
  %292 = vmatprep.mubr.bf16.mxu0 0
  %293 = vmatmul.mubr.bf16.gmra.mrb[0].mxu0 %v249
  %v294 = vpop.f32.mrb[0].mxu0
  %v295 = vadd.f32 %v234, %v294
  %v296 = vpop.f32.mrb[0].mxu0
  %v297 = vpop.f32.mrb[0].mxu0
  %v298 = vadd.f32 %v237, %v297
  %v299 = vpop.f32.mrb[0].mxu0
  %300 = vdwg.mxu0
  %s301 = scalar_lea.vmem %s1, 32
  %v302 = vld [vmem:[%s301] sm:$0xf]
  %v303 = vld [vmem:[%s301 + $0x4] sm:$0xf]
  %v304 = vld [vmem:[%s301 + $0x8] sm:$0xf]
  %v305 = vld [vmem:[%s301 + $0xc] sm:$0xf]
  %v310 = vunpack.c.l.b16 %v302
  %v311 = vunpack.c.l.b16 %v303
  %v312 = vunpack.c.l.b16 %v304
  %v313 = vunpack.c.l.b16 %v305
  %v314 = vpack.c.b16 %v311, %v310
  %v315 = vpack.c.b16 %v313, %v312
  %318 = vmatprep.subr.bf16.mxu0 0
  %319 = vmatpush1.bf16.msra.mxu0 %v162
  %320 = vmatprep.subr.bf16.mxu0 0
  %321 = vmatpush1.bf16.msra.mxu0 %v163
  %322 = vmatprep.subr.bf16.mxu0 0
  %323 = vmatpush1.bf16.msra.mxu0 %v164
  %324 = vmatprep.subr.bf16.mxu0 0
  %325 = vmatpush1.bf16.msra.mxu0 %v165
  %326 = vmatprep.subr.bf16.mxu0 0
  %327 = vmatpush1.bf16.msra.mxu0 %v166
  %328 = vmatprep.subr.bf16.mxu0 0
  %329 = vmatpush1.bf16.msra.mxu0 %v167
  %330 = vmatprep.subr.bf16.mxu0 0
  %331 = vmatpush1.bf16.msra.mxu0 %v168
  %332 = vmatprep.subr.bf16.mxu0 0
  %333 = vmatpush1.bf16.msra.mxu0 %v169
  %334 = vmatprep.subr.bf16.mxu0 0
  %335 = vmatpush1.bf16.msra.mxu0 0
  %336 = vmatprep.subr.bf16.mxu0 0
  %337 = vmatpush1.bf16.msra.mxu0 0
  %338 = vmatprep.subr.bf16.mxu0 0
  %339 = vmatpush1.bf16.msra.mxu0 0
  %340 = vmatprep.subr.bf16.mxu0 0
  %341 = vmatpush1.bf16.msra.mxu0 0
  %342 = vmatprep.subr.bf16.mxu0 0
  %343 = vmatpush1.bf16.msra.mxu0 0
  %344 = vmatprep.subr.bf16.mxu0 0
  %345 = vmatpush1.bf16.msra.mxu0 0
  %346 = vmatprep.subr.bf16.mxu0 0
  %347 = vmatpush1.bf16.msra.mxu0 0
  %348 = vmatprep.subr.bf16.mxu0 0
  %349 = vmatpush1.bf16.msra.mxu0 0
  %350 = vmatprep.mubr.bf16.mxu0 0
  %351 = vmatmul.mubr.bf16.gmra.mrb[0].mxu0 %v314
  %v352 = vpop.f32.mrb[0].mxu0
  %v353 = vadd.f32 0.0, %v352
  %v354 = vpop.f32.mrb[0].mxu0
  %v355 = vpop.f32.mrb[0].mxu0
  %v356 = vadd.f32 0.0, %v355
  %v357 = vpop.f32.mrb[0].mxu0
  %358 = vmatprep.mubr.bf16.mxu0 0
  %359 = vmatmul.mubr.bf16.gmra.mrb[0].mxu0 %v315
  %v360 = vpop.f32.mrb[0].mxu0
  %v361 = vadd.f32 0.0, %v360
  %v362 = vpop.f32.mrb[0].mxu0
  %v363 = vpop.f32.mrb[0].mxu0
  %v364 = vadd.f32 0.0, %v363
  %v365 = vpop.f32.mrb[0].mxu0
  %366 = vdwg.mxu0
  %v367 = vadd.f32 %v287, %v353
  %v368 = vadd.f32 %v290, %v356
  %v369 = vadd.f32 %v295, %v361
  %v370 = vadd.f32 %v298, %v364
  %v371 = vadd.f32 %v367, %v368
  %v372 = vadd.f32 %v371, %v369
  %v373 = vadd.f32 %v372, %v370
  %v374 = vrot.slane %v373, 4
  %v375 = vadd.f32 %v373, %v374
  %v376 = vrot.slane %v375, 2
  %v377 = vadd.f32 %v375, %v376
  %v378 = vrot.slane %v377, 1
  %v379 = vadd.f32 %v377, %v378
  %v380 = vrcp.pop 32.0
  %v381 = vmul.f32 %v379, %v380
  %v382 = vsub.f32 %v367, %v381
  %v383 = vsub.f32 %v368, %v381
  %v384 = vsub.f32 %v369, %v381
  %v385 = vsub.f32 %v370, %v381
  %v386 = vmul.f32 %v382, %v382
  %v387 = vmul.f32 %v383, %v383
  %v388 = vmul.f32 %v384, %v384
  %v389 = vmul.f32 %v385, %v385
  %v390 = vadd.f32 %v386, %v387
  %v391 = vadd.f32 %v390, %v388
  %v392 = vadd.f32 %v391, %v389
  %v393 = vrot.slane %v392, 4
  %v394 = vadd.f32 %v392, %v393
  %v395 = vrot.slane %v394, 2
  %v396 = vadd.f32 %v394, %v395
  %v397 = vrot.slane %v396, 1
  %v398 = vadd.f32 %v396, %v397
  %v399 = vmul.f32 %v398, %v380
  %v400 = vadd.f32 %v399, 1e-12
  %v401 = vrsqrt.pop %v400
  %v402 = vmul.f32 %v382, %v401
  %v403 = vmul.f32 %v383, %v401
  %v404 = vmul.f32 %v384, %v401
  %v405 = vmul.f32 %v385, %v401
  %v406 = vld [vmem:[%s2] sm:$0xff]
  %v407 = vld [vmem:[%s2 + $0x8] sm:$0xff]
  %v408 = vld [vmem:[%s2 + $0x10] sm:$0xff]
  %v409 = vld [vmem:[%s2 + $0x18] sm:$0xff]
  %411 = vset.pattern.permute.xlu0 0
  %412 = vperm.xlu0 %411, %v406
  %v413 = vpop.permute.xlu0 %412
  %416 = vset.pattern.permute.xlu0 0
  %417 = vperm.xlu0 %416, %v407
  %v418 = vpop.permute.xlu0 %417
  %421 = vset.pattern.permute.xlu0 0
  %422 = vperm.xlu0 %421, %v408
  %v423 = vpop.permute.xlu0 %422
  %426 = vset.pattern.permute.xlu0 0
  %427 = vperm.xlu0 %426, %v409
  %v428 = vpop.permute.xlu0 %427
  %v430 = vmul.f32 %v402, %v413
  %v431 = vmul.f32 %v403, %v418
  %v432 = vmul.f32 %v404, %v423
  %v433 = vmul.f32 %v405, %v428
  %v434 = vld [vmem:[%s3] sm:$0xff]
  %v435 = vld [vmem:[%s3 + $0x8] sm:$0xff]
  %v436 = vld [vmem:[%s3 + $0x10] sm:$0xff]
  %v437 = vld [vmem:[%s3 + $0x18] sm:$0xff]
  %439 = vset.pattern.permute.xlu0 0
  %440 = vperm.xlu0 %439, %v434
  %v441 = vpop.permute.xlu0 %440
  %444 = vset.pattern.permute.xlu0 0
  %445 = vperm.xlu0 %444, %v435
  %v446 = vpop.permute.xlu0 %445
  %449 = vset.pattern.permute.xlu0 0
  %450 = vperm.xlu0 %449, %v436
  %v451 = vpop.permute.xlu0 %450
  %454 = vset.pattern.permute.xlu0 0
  %455 = vperm.xlu0 %454, %v437
  %v456 = vpop.permute.xlu0 %455
  %v458 = vadd.f32 %v430, %v441
  %v459 = vadd.f32 %v431, %v446
  %v460 = vadd.f32 %v432, %v451
  %v461 = vadd.f32 %v433, %v456
  %462 = vst [vmem:[%s4] sm:$0xff] %v458
  %463 = vst [vmem:[%s4 + $0x8] sm:$0xff] %v459
  %464 = vst [vmem:[%s4 + $0x10] sm:$0xff] %v460
  %465 = vst [vmem:[%s4 + $0x18] sm:$0xff] %v461
  // Predicated region
  $region18: #{bert_embeddings.1} parent=0 // pred_check
    _
  $region19: #{bert_embeddings.1} parent=0 // pred_check_branch
    %467 = sbr.rel (0) target = $region21
  $region20: #{bert_embeddings.1} parent=0 // pred_region
    _
  $region21: #{bert_embeddings.1} parent=0 // pred_fallthru
    _
  // Predicated region
  $region22: #{bert_embeddings.1} parent=0 // pred_check
    _
  $region23: #{bert_embeddings.1} parent=0 // pred_check_branch
    %469 = sbr.rel (0) target = $region25
  $region24: #{bert_embeddings.1} parent=0 // pred_region
    _
  $region25: #{bert_embeddings.1} parent=0 // pred_fallthru
    _

</llo_original>
